<compile_context>
chip_gen: v5e
topology: v5e:2x2
jax: 0.10.0
libtpu: 0.0.40
codegen_flags: <defaults>
</compile_context>

<pallas_src>
import jax
import jax.numpy as jnp
from jax.experimental import pallas as pl
from jax.experimental.pallas import tpu as pltpu


def _round_up(a: int, b: int) -> int:
    return ((a + b - 1) // b) * b


def ffn_kernel(x_ref, w_ref, b_ref, o_ref):
    # x_ref: (tm, Hp) bf16, w_ref: (Hp, tn) bf16, b_ref: (1, tn) f32, o_ref: (tm, tn).
    acc = jnp.dot(x_ref[...], w_ref[...], preferred_element_type=jnp.float32)
    o_ref[...] = (acc + b_ref[...]).astype(o_ref.dtype)


def fold_ffn_params(w1, b1, w2, b2, *, compute_dtype=jnp.bfloat16):
    """One-time (parameter-load-time) weight fold + pad + cast.

    w1: (H, F)  == conv1.weight[..., 0].T      b1: (F,) == conv1.bias
    w2: (F, H)  == conv2.weight[..., 0].T      b2: (H,) == conv2.bias

    Valid ONLY because the module has no activation between conv1 and conv2
    (and eval-mode dropout is identity).
    """
    H, F = w1.shape
    assert w2.shape == (F, H), (w1.shape, w2.shape)
    w_eff = jnp.dot(w1.astype(jnp.float32), w2.astype(jnp.float32))              # (H, H)
    b_eff = jnp.dot(b1.astype(jnp.float32), w2.astype(jnp.float32)) + b2.astype(jnp.float32)
    Hp = _round_up(H, 128)
    w_p = jnp.zeros((Hp, Hp), compute_dtype).at[:H, :H].set(w_eff.astype(compute_dtype))
    b_p = jnp.zeros((1, Hp), jnp.float32).at[0, :H].set(b_eff)
    return w_p, b_p


def ffn_apply(x, w_p, b_p, *, tm=512, tn=512):
    """out = x @ W_eff + b_eff for x of shape (B, S, H), with pre-folded params."""
    B, S, H = x.shape
    M = B * S
    Hp = w_p.shape[0]
    out_dtype = x.dtype
    out_itemsize = jnp.dtype(out_dtype).itemsize

    # --- M (row) tiling: ensure >= 2 tiles when possible so both v7x TCs get work.
    tm = max(8, _round_up(min(tm, _round_up(M, 8)), 8))
    if M > 8 and _round_up(M, tm) // tm < 2:
        tm = _round_up(-(-M // 2), 8)
    Mp = _round_up(M, tm)

    # --- N (output hidden) tiling: largest multiple of 128 <= tn that divides Hp.
    tn = max(128, min(_round_up(tn, 128), Hp))
    while Hp % tn != 0:
        tn -= 128

    # --- Pack x rows to bf16 / lane-dense shape (skipped if already aligned+bf16).
    x2 = x.reshape(M, H)
    if M == Mp and H == Hp and x2.dtype == jnp.bfloat16:
        x_in = x2
    else:
        x_in = jnp.zeros((Mp, Hp), jnp.bfloat16).at[:M, :H].set(x2.astype(jnp.bfloat16))

    # VMEM budget: double-buffered x / W / bias / out tiles, capped at 64 MiB
    # (safe on v7x's 64 MiB/TC as well as v5e/v6e's 128 MiB).
    vmem_need = 2 * (tm * Hp * 2 + Hp * tn * 2 + tn * 4 + tm * tn * out_itemsize)
    vmem_limit = int(min(64 * 1024 * 1024, max(32 * 1024 * 1024, 2 * vmem_need)))

    cost = pl.CostEstimate(
        flops=2 * M * H * H,
        transcendentals=0,
        bytes_accessed=int(x_in.nbytes + w_p.nbytes + b_p.nbytes + M * H * out_itemsize),
    )

    out2d = pl.pallas_call(
        ffn_kernel,
        out_shape=jax.ShapeDtypeStruct((Mp, Hp), out_dtype),
        grid_spec=pltpu.PrefetchScalarGridSpec(
            num_scalar_prefetch=0,
            grid=(Mp // tm, Hp // tn),
            in_specs=[
                pl.BlockSpec((tm, Hp), lambda i, j: (i, 0)),   # x row tile   (bf16)
                pl.BlockSpec((Hp, tn), lambda i, j: (0, j)),   # W_eff N-tile (bf16)
                pl.BlockSpec((1, tn),  lambda i, j: (0, j)),   # b_eff N-tile (f32)
            ],
            out_specs=pl.BlockSpec((tm, tn), lambda i, j: (i, j)),
        ),
        compiler_params=pltpu.CompilerParams(
            dimension_semantics=("parallel", "parallel"),
            vmem_limit_bytes=vmem_limit,
        ),
        cost_estimate=cost,
    )(x_in, w_p, b_p)

    return out2d[:M, :H].reshape(B, S, H)


def position_wise_feed_forward(x, w1, b1, w2, b2, *, tm=512, tn=512):
    """Convenience path. In real use call fold_ffn_params ONCE at weight-load time."""
    # TODO(synk): training-mode dropout (needs RNG) not implemented; eval-mode
    # dropout is identity, which is what this kernel computes.
    w_p, b_p = fold_ffn_params(w1, b1, w2, b2)
    return ffn_apply(x, w_p, b_p, tm=tm, tn=tn)


if __name__ == "__main__":
    # Small shapes consistent with the module: batch=2, seq=8, hidden=32, ffn=64.
    B, S, H, FF = 2, 8, 32, 64

    key = jax.random.PRNGKey(0)
    kx, k1, k2, k3, k4 = jax.random.split(key, 5)

    x = jax.random.normal(kx, (B, S, H), dtype=jnp.float32)

    # conv1.weight (FF, H, 1) -> stored as W1^T (H, FF); conv2.weight (H, FF, 1) -> W2^T (FF, H)
    w1 = (jax.random.normal(k1, (FF, H), dtype=jnp.float32) * 0.02).T   # (H, FF)
    b1 = jax.random.normal(k2, (FF,), dtype=jnp.float32) * 0.02
    w2 = (jax.random.normal(k3, (H, FF), dtype=jnp.float32) * 0.02).T   # (FF, H)
    b2 = jax.random.normal(k4, (H,), dtype=jnp.float32) * 0.02

    # One-time parameter fold (do this at weight-load time in real use).
    w_p, b_p = fold_ffn_params(w1, b1, w2, b2)
    w_p, b_p = jax.block_until_ready((w_p, b_p))

    out = ffn_apply(x, w_p, b_p)
    out = jax.block_until_ready(out)

    # Pure-JAX reference of the eval-mode forward: conv1 -> conv2
    # (no activation in the module, dropout = identity).
    ref = ((x.reshape(-1, H) @ w1 + b1) @ w2 + b2).reshape(B, S, H)
    assert out.shape == ref.shape and out.dtype == ref.dtype
    # bf16 matmul inputs (x, W_eff) with f32 accumulation -> loosened tolerance vs f32.
    assert jnp.allclose(out, ref, atol=2e-3, rtol=2e-2), "mismatch vs reference"

    print("KERNEL_OK")
</pallas_src>

<mosaic_0001>
module attributes {stable_mosaic.version = 11 : i64} {
  func.func @ffn_kernel(%arg0: i32, %arg1: i32, %arg2: memref<8x128xbf16, #tpu.memory_space<vmem>>, %arg3: memref<128x128xbf16, #tpu.memory_space<vmem>>, %arg4: memref<1x128xf32, #tpu.memory_space<vmem>>, %arg5: memref<8x128xf32, #tpu.memory_space<vmem>>) attributes {dimension_semantics = [#tpu.dimension_semantics<parallel>, #tpu.dimension_semantics<parallel>], iteration_bounds = array<i64: 2, 1>, scalar_prefetch = 0 : i64, scratch_operands = 0 : i64, tpu.core_type = #tpu.core_type<tc>, window_params = [{transform_indices = @transform_0, window_bounds = array<i64: 8, 128>}, {transform_indices = @transform_1, window_bounds = array<i64: 128, 128>}, {transform_indices = @transform_2, window_bounds = array<i64: 1, 128>}, {transform_indices = @transform_3, window_bounds = array<i64: 8, 128>}]} {
    %c0 = arith.constant 0 : index
    %c0_0 = arith.constant 0 : index
    %0 = vector.load %arg2[%c0, %c0_0] : memref<8x128xbf16, #tpu.memory_space<vmem>>, vector<8x128xbf16>
    %c0_1 = arith.constant 0 : index
    %c0_2 = arith.constant 0 : index
    %1 = vector.load %arg3[%c0_1, %c0_2] : memref<128x128xbf16, #tpu.memory_space<vmem>>, vector<128x128xbf16>
    %cst = arith.constant dense<0.000000e+00> : vector<8x128xf32>
    %2 = tpu.matmul %0, %1, %cst {dimension_numbers = #tpu.dot_dimension_numbers<[1], [0], [0], [1], [0, 0, 1, 1], [], []>} : vector<8x128xbf16>, vector<128x128xbf16>, vector<8x128xf32> -> vector<8x128xf32>
    %c0_3 = arith.constant 0 : index
    %c0_4 = arith.constant 0 : index
    %3 = vector.load %arg4[%c0_3, %c0_4] : memref<1x128xf32, #tpu.memory_space<vmem>>, vector<1x128xf32>
    %4 = vector.broadcast %3 : vector<1x128xf32> to vector<8x128xf32>
    %5 = arith.addf %2, %4 : vector<8x128xf32>
    %c0_5 = arith.constant 0 : index
    %c0_6 = arith.constant 0 : index
    %6 = vector.load %arg5[%c0_5, %c0_6] : memref<8x128xf32, #tpu.memory_space<vmem>>, vector<8x128xf32>
    tpu.vector_store %arg5[%c0_5, %c0_6], %5 {strides = array<i32>} : memref<8x128xf32, #tpu.memory_space<vmem>>, vector<8x128xf32>,
    return
  }
  func.func @transform_0(%arg0: i32, %arg1: i32) -> (i32, i32) {
    %c0_i32 = arith.constant 0 : i32
    %c0_i32_0 = arith.constant 0 : i32
    return %arg0, %c0_i32 : i32, i32
  }
  func.func @transform_1(%arg0: i32, %arg1: i32) -> (i32, i32) {
    %c0_i32 = arith.constant 0 : i32
    %c0_i32_0 = arith.constant 0 : i32
    return %c0_i32, %arg1 : i32, i32
  }
  func.func @transform_2(%arg0: i32, %arg1: i32) -> (i32, i32) {
    %c0_i32 = arith.constant 0 : i32
    %c0_i32_0 = arith.constant 0 : i32
    return %c0_i32, %arg1 : i32, i32
  }
  func.func @transform_3(%arg0: i32, %arg1: i32) -> (i32, i32) {
    %c0_i32 = arith.constant 0 : i32
    return %arg0, %arg1 : i32, i32
  }
}

</mosaic_0001>

<llo_original>
// kernel: tpu_custom_call.1
$region0: #{tpu_custom_call.1}
  #allocation0 [shape = 'u32[]', space=smem, size = 0x4, offset = 0x4, fixed_abs, tag = 'smem constant byte address 0x4 - core index']
  #allocation1 [shape = 'u32[72,128]{1,0:T(1,128)}', space=vmem, size = 0x9000, scoped, tag = 'internal scratch']
  %s0 = inlined_call_operand.hbm [shape: bf16[16,128], index: 0, kind: input, shape index: {}]
  %s1 = inlined_call_operand.hbm [shape: bf16[128,128], index: 1, kind: input, shape index: {}]
  %s2 = inlined_call_operand.vmem [shape: f32[1,128], index: 2, kind: input, shape index: {}]
  %s3 = inlined_call_operand.hbm [shape: f32[16,128], index: 3, kind: output, shape index: {}]
  %s4 = sld [smem:[#allocation0]]
  $region53: #{tpu_custom_call.1} parent=0
    _
  %s6 = ssub.s32 1, %s4
  %s7 = scalar_select 0, %s6, %s4
  $region1: #{tpu_custom_call.1} parent=0
    #allocation2 [shape = 'u8[4096]{0}', space=vmem, size = 0x1000, scoped, tag = 'input window, operand 0']
    #allocation3 [shape = 's32[2]{0}', space=sflag, size = 0x8, scoped, tag = 'scoped memory for tpu_custom_call.1']
    #allocation4 [shape = 's32[2]{0}', space=sflag, size = 0x8, scoped, tag = 'scoped memory for tpu_custom_call.1']
    #allocation5 [shape = 'u8[32768]{0}', space=vmem, size = 0x8000, scoped, tag = 'input window, operand 1, single buffered']
    #allocation6 [shape = 's32[1]{0}', space=sflag, size = 0x4, scoped, tag = 'scoped memory for tpu_custom_call.1']
    #allocation7 [shape = 'u8[8192]{0}', space=vmem, size = 0x2000, scoped, tag = 'output window, operand 0']
    %8 = vsyncpa [#allocation3], 0
    %s9 = scalar_lea.sflag [#allocation3], 1
    %10 = vsyncpa %s9, 0
    %11 = vsyncpa [#allocation6], 0
    %12 = vsyncpa [#allocation4], 0
    %s13 = scalar_lea.sflag [#allocation4], 1
    %14 = vsyncpa %s13, 0
    loop: start=0, step=1, limit=4
    $region2: #{tpu_custom_call.1} parent=1 // loop_pre_header
      _
    $region3: #{tpu_custom_call.1} parent=1 // loop_header
      %s16 = sphi 0, %s20
      %p17 = scmp.ge.s32.totalorder %s16, 4
      %s23 = sphi 0, %s35
      %s24 = sphi 0, %s31
      %s25 = sphi 0, %s23
      %s26 = sphi 0, %s24
      %s27 = sphi 0, %s25
      %s28 = sphi 0, %s26
      %s38 = sphi 0, %s40
      %s41 = sphi 0, %s38
      %s42 = sphi 0, %s41
      %s58 = sphi 0, %s42
      %s64 = sphi 0, %s66
      %s67 = sphi 0, %s64
      %s68 = sphi 0, %s67
      %s84 = sphi 0, %s68
      %s90 = sphi 0, %s92
      %s93 = sphi 0, %s90
      %s94 = sphi 0, %s93
      %s110 = sphi 0, %s94
      %s118 = sphi 0, %s120
      %s121 = sphi 0, %s118
      %s122 = sphi 0, %s121
      %s138 = sphi 0, %s122
    $region4: #{tpu_custom_call.1} parent=1 // loop_header_branch
      %19 = sbr.rel (%p17) target = $region8
    $region5: #{tpu_custom_call.1} parent=1 // loop_body
      %s21 = ssub.s32 %s16, 1
      %s22 = ssub.s32 %s16, 2
      %s29 = sadd.s32 1, %s24
      %p30 = scmp.ge.s32.totalorder %s29, 1
      %s31 = scalar_select %p30, 0, %s29
      %s32 = sadd.s32 1, %s23
      %s33 = scalar_select %p30, %s32, %s23
      %p34 = scmp.ge.s32.totalorder %s33, 2
      %s35 = scalar_select %p34, 0, %s33
      %s36 = ssub.s32 %s23, %s35
      %p37 = scmp.eq.s32.totalorder %s36, 0
      %s39 = sadd.s32 %s38, 1
      %s40 = scalar_select %p37, %s38, %s39
      %p43 = pneg %p37
      %p44 = scmp.eq.s32.totalorder %s16, 1
      %p45 = por %p43, %p44
      %p46 = scmp.ne.s32.totalorder %s38, %s41
      %p47 = scmp.eq.s32.totalorder %s16, 0
      %p48 = por %p46, %p47
      %p49 = scmp.ne.s32.totalorder %s38, %s41
      %p50 = scmp.eq.s32.totalorder %s21, 1
      %p51 = por %p49, %p50
      %p52 = scmp.ne.s32.totalorder %s41, %s42
      %p53 = scmp.eq.s32.totalorder %s21, 0
      %p54 = por %p52, %p53
      %p55 = scmp.ne.s32.totalorder %s41, %s42
      %p56 = scmp.eq.s32.totalorder %s22, 1
      %p57 = por %p55, %p56
      %p59 = scmp.ne.s32.totalorder %s42, %s58
      %p60 = scmp.eq.s32.totalorder %s22, 0
      %p61 = por %p59, %p60
      %s62 = ssub.s32 %s24, %s31
      %p63 = scmp.eq.s32.totalorder %s62, 0
      %s65 = sadd.s32 %s64, 1
      %s66 = scalar_select %p63, %s64, %s65
      %p69 = pneg %p63
      %p70 = scmp.eq.s32.totalorder %s16, 1
      %p71 = por %p69, %p70
      %p72 = scmp.ne.s32.totalorder %s64, %s67
      %p73 = scmp.eq.s32.totalorder %s16, 0
      %p74 = por %p72, %p73
      %p75 = scmp.ne.s32.totalorder %s64, %s67
      %p76 = scmp.eq.s32.totalorder %s21, 1
      %p77 = por %p75, %p76
      %p78 = scmp.ne.s32.totalorder %s67, %s68
      %p79 = scmp.eq.s32.totalorder %s21, 0
      %p80 = por %p78, %p79
      %p81 = scmp.ne.s32.totalorder %s67, %s68
      %p82 = scmp.eq.s32.totalorder %s22, 1
      %p83 = por %p81, %p82
      %p85 = scmp.ne.s32.totalorder %s68, %s84
      %p86 = scmp.eq.s32.totalorder %s22, 0
      %p87 = por %p85, %p86
      %s88 = ssub.s32 %s24, %s31
      %p89 = scmp.eq.s32.totalorder %s88, 0
      %s91 = sadd.s32 %s90, 1
      %s92 = scalar_select %p89, %s90, %s91
      %p95 = pneg %p89
      %p96 = scmp.eq.s32.totalorder %s16, 1
      %p97 = por %p95, %p96
      %p98 = scmp.ne.s32.totalorder %s90, %s93
      %p99 = scmp.eq.s32.totalorder %s16, 0
      %p100 = por %p98, %p99
      %p101 = scmp.ne.s32.totalorder %s90, %s93
      %p102 = scmp.eq.s32.totalorder %s21, 1
      %p103 = por %p101, %p102
      %p104 = scmp.ne.s32.totalorder %s93, %s94
      %p105 = scmp.eq.s32.totalorder %s21, 0
      %p106 = por %p104, %p105
      %p107 = scmp.ne.s32.totalorder %s93, %s94
      %p108 = scmp.eq.s32.totalorder %s22, 1
      %p109 = por %p107, %p108
      %p111 = scmp.ne.s32.totalorder %s94, %s110
      %p112 = scmp.eq.s32.totalorder %s22, 0
      %p113 = por %p111, %p112
      %s114 = ssub.s32 %s23, %s35
      %s115 = ssub.s32 %s24, %s31
      %s116 = sor.u32 %s114, %s115
      %p117 = scmp.eq.s32.totalorder %s116, 0
      %s119 = sadd.s32 %s118, 1
      %s120 = scalar_select %p117, %s118, %s119
      %p123 = pneg %p117
      %p124 = scmp.eq.s32.totalorder %s16, 1
      %p125 = por %p123, %p124
      %p126 = scmp.ne.s32.totalorder %s118, %s121
      %p127 = scmp.eq.s32.totalorder %s16, 0
      %p128 = por %p126, %p127
      %p129 = scmp.ne.s32.totalorder %s118, %s121
      %p130 = scmp.eq.s32.totalorder %s21, 1
      %p131 = por %p129, %p130
      %p132 = scmp.ne.s32.totalorder %s121, %s122
      %p133 = scmp.eq.s32.totalorder %s21, 0
      %p134 = por %p132, %p133
      %p135 = scmp.ne.s32.totalorder %s121, %s122
      %p136 = scmp.eq.s32.totalorder %s22, 1
      %p137 = por %p135, %p136
      %p139 = scmp.ne.s32.totalorder %s122, %s138
      %p140 = scmp.eq.s32.totalorder %s22, 0
      %p141 = por %p139, %p140
      %p142 = scmp.le.s32.totalorder 1, %s16
      %p143 = scmp.lt.s32.totalorder %s16, 3
      %p144 = pnand %p142, %p143
      %p145 = pneg %p144
      // Predicated region
      $region9: #{tpu_custom_call.1} parent=5 // pred_check
        _
      $region10: #{tpu_custom_call.1} parent=5 // pred_check_branch
        %147 = sbr.rel (%p144) target = $region12
      $region11: #{tpu_custom_call.1} parent=5 // pred_region
        %s148 = ssub.s32 %s16, 1
        // Predicated region
        $region13: #{tpu_custom_call.1} parent=11 // pred_check
          %p149 = pneg %p80
        $region14: #{tpu_custom_call.1} parent=11 // pred_check_branch
          %151 = sbr.rel (%p149) target = $region16
        $region15: #{tpu_custom_call.1} parent=11 // pred_region
          %153 = vsyncadd [#allocation6], 0
          %s154 = smul.addr %s26, 4
          %s155 = scalar_lea.hbm %s1, %s154
          %s156 = sshll.u32 %s155, 4
          %s157 = int_to_ptr.hbm [resolvable:$true] %s156
          %s158 = sshll.u32 [#allocation5], 4
          %s159 = int_to_ptr.vmem [resolvable:$true] %s158
          %164 = dma.hbm_to_vmem [thread:$0]  %s157, 1024, %s159, [#allocation6], 64, 64, 4
        $region16: #{tpu_custom_call.1} parent=11 // pred_fallthru
          _
        // Predicated region
        $region17: #{tpu_custom_call.1} parent=11 // pred_check
          %p165 = pneg %p106
        $region18: #{tpu_custom_call.1} parent=11 // pred_check_branch
          %167 = sbr.rel (%p165) target = $region20
        $region19: #{tpu_custom_call.1} parent=11 // pred_region
          %p168 = scmp.lt.s32.totalorder %s26, 0
          %s169 = scalar_select %p168, %s26, 0
          %s170 = scalar_lea.vmem %s2, %s169
        $region20: #{tpu_custom_call.1} parent=11 // pred_fallthru
          _
      $region12: #{tpu_custom_call.1} parent=5 // pred_fallthru
        _
      %p171 = scmp.lt.s32.totalorder %s16, 2
      // Predicated region
      $region21: #{tpu_custom_call.1} parent=5 // pred_check
        %p172 = pneg %p171
      $region22: #{tpu_custom_call.1} parent=5 // pred_check_branch
        %174 = sbr.rel (%p172) target = $region24
      $region23: #{tpu_custom_call.1} parent=5 // pred_region
        // Predicated region
        $region25: #{tpu_custom_call.1} parent=23 // pred_check
          %p175 = pneg %p48
        $region26: #{tpu_custom_call.1} parent=23 // pred_check_branch
          %177 = sbr.rel (%p175) target = $region28
        $region27: #{tpu_custom_call.1} parent=23 // pred_region
          %s178 = sand.u32 %s38, 1
          %s179 = scalar_lea.sflag [#allocation3], %s178
          %s180 = sand.u32 %s38, 1
          %s181 = smul.addr %s180, 4
          %s182 = scalar_lea.vmem [#allocation2], %s181
          %184 = vsyncadd %s179, 0
          %s185 = smul.addr %s23, 4
          %s186 = scalar_lea.hbm %s0, %s185
          %s188 = sshll.u32 %s186, 4
          %s189 = int_to_ptr.hbm [resolvable:$true] %s188
          %s190 = sshll.u32 %s182, 4
          %s191 = int_to_ptr.vmem [resolvable:$true] %s190
          %193 = dma.hbm_to_vmem [thread:$0]  %s189, 64, %s191, %s179
        $region28: #{tpu_custom_call.1} parent=23 // pred_fallthru
          _
      $region24: #{tpu_custom_call.1} parent=5 // pred_fallthru
        _
      %p194 = scmp.le.s32.totalorder 1, %s16
      %p195 = scmp.lt.s32.totalorder %s16, 3
      %p196 = pnand %p194, %p195
      %p197 = pneg %p196
      // Predicated region
      $region29: #{tpu_custom_call.1} parent=5 // pred_check
        _
      $region30: #{tpu_custom_call.1} parent=5 // pred_check_branch
        %199 = sbr.rel (%p196) target = $region32
      $region31: #{tpu_custom_call.1} parent=5 // pred_region
        %s200 = ssub.s32 %s16, 1
        %s201 = sand.u32 %s41, 1
        %s202 = scalar_lea.sflag [#allocation3], %s201
        %s203 = sand.u32 %s41, 1
        %s204 = smul.addr %s203, 4
        %s205 = scalar_lea.vmem [#allocation2], %s204
        // Predicated region
        $region33: #{tpu_custom_call.1} parent=31 // pred_check
          %p206 = pneg %p54
        $region34: #{tpu_custom_call.1} parent=31 // pred_check_branch
          %208 = sbr.rel (%p206) target = $region36
        $region35: #{tpu_custom_call.1} parent=31 // pred_region
          %210 = dma.done %s202, 64
        $region36: #{tpu_custom_call.1} parent=31 // pred_fallthru
          _
        // Predicated region
        $region37: #{tpu_custom_call.1} parent=31 // pred_check
          %p211 = pneg %p80
        $region38: #{tpu_custom_call.1} parent=31 // pred_check_branch
          %213 = sbr.rel (%p211) target = $region40
        $region39: #{tpu_custom_call.1} parent=31 // pred_region
          %215 = dma.done [#allocation6], 1024
        $region40: #{tpu_custom_call.1} parent=31 // pred_fallthru
          _
        %s216 = sand.u32 %s41, 1
        %s217 = scalar_lea.sflag [#allocation3], %s216
        %s218 = sand.u32 %s41, 1
        %s219 = smul.addr %s218, 4
        %s220 = scalar_lea.vmem [#allocation2], %s219
        %p221 = pneg %p54
        %p222 = pneg %p51
        %p223 = pneg %p80
        %p224 = pneg %p77
        %p225 = scmp.lt.s32.totalorder %s26, 0
        %s226 = scalar_select %p225, %s26, 0
        %s227 = scalar_lea.vmem %s2, %s226
        %p228 = pneg %p106
        %p229 = pneg %p103
        %p230 = pneg %p134
        %p231 = pneg %p131
        %s232 = sand.u32 %s121, 1
        %s233 = scalar_lea.sflag [#allocation4], %s232
        %s234 = sand.u32 %s121, 1
        %s235 = smul.addr %s234, 8
        %s236 = scalar_lea.vmem [#allocation7], %s235
        %p237 = scmp.lt.s32.totalorder %s26, 0
        %s238 = scalar_select %p237, %s26, 0
        %s239 = scalar_lea.vmem %s2, %s238
        %v240 = vld [vmem:[%s205] sm:$0xf]
        %v241 = vld [vmem:[#allocation5] sm:$0xf]
        %v242 = vld [vmem:[#allocation5 + $0x4] sm:$0xf]
        %v243 = vld [vmem:[#allocation5 + $0x8] sm:$0xf]
        %v244 = vld [vmem:[#allocation5 + $0xc] sm:$0xf]
        %v245 = vld [vmem:[#allocation5 + $0x10] sm:$0xf]
        %v246 = vld [vmem:[#allocation5 + $0x14] sm:$0xf]
        %v247 = vld [vmem:[#allocation5 + $0x18] sm:$0xf]
        %v248 = vld [vmem:[#allocation5 + $0x1c] sm:$0xf]
        %v249 = vld [vmem:[#allocation5 + $0x20] sm:$0xf]
        %v250 = vld [vmem:[#allocation5 + $0x24] sm:$0xf]
        %v251 = vld [vmem:[#allocation5 + $0x28] sm:$0xf]
        %v252 = vld [vmem:[#allocation5 + $0x2c] sm:$0xf]
        %v253 = vld [vmem:[#allocation5 + $0x30] sm:$0xf]
        %v254 = vld [vmem:[#allocation5 + $0x34] sm:$0xf]
        %v255 = vld [vmem:[#allocation5 + $0x38] sm:$0xf]
        %v256 = vld [vmem:[#allocation5 + $0x3c] sm:$0xf]
        %v257 = vld [vmem:[%s239] sm:$0x1]
        %v259 = vperm.slane %v257, 0
        %v277 = vunpack.c.l.b16 %v241
        %v278 = vunpack.c.l.b16 %v242
        %v279 = vunpack.c.l.b16 %v243
        %v280 = vunpack.c.l.b16 %v244
        %v281 = vunpack.c.l.b16 %v245
        %v282 = vunpack.c.l.b16 %v246
        %v283 = vunpack.c.l.b16 %v247
        %v284 = vunpack.c.l.b16 %v248
        %v285 = vunpack.c.l.b16 %v249
        %v286 = vunpack.c.l.b16 %v250
        %v287 = vunpack.c.l.b16 %v251
        %v288 = vunpack.c.l.b16 %v252
        %v289 = vunpack.c.l.b16 %v253
        %v290 = vunpack.c.l.b16 %v254
        %v291 = vunpack.c.l.b16 %v255
        %v292 = vunpack.c.l.b16 %v256
        %v293 = vpack.c.b16 %v278, %v277
        %v294 = vpack.c.b16 %v280, %v279
        %v295 = vpack.c.b16 %v282, %v281
        %v296 = vpack.c.b16 %v284, %v283
        %v297 = vpack.c.b16 %v286, %v285
        %v298 = vpack.c.b16 %v288, %v287
        %v299 = vpack.c.b16 %v290, %v289
        %v300 = vpack.c.b16 %v292, %v291
        %309 = vmatpush.bf16.msra.mxu0 %v300
        %310 = vmatpush.bf16.msra.mxu0 %v299
        %311 = vmatpush.bf16.msra.mxu0 %v298
        %312 = vmatpush.bf16.msra.mxu0 %v297
        %313 = vmatpush.bf16.msra.mxu0 %v296
        %314 = vmatpush.bf16.msra.mxu0 %v295
        %315 = vmatpush.bf16.msra.mxu0 %v294
        %316 = vmatpush.bf16.msra.mxu0 %v293
        %317 = vmatmul.bf16.gmra.mxu0 %v240
        %v318 = vpop.f32.mrf.mxu0
        %v319 = vadd.f32 %v259, %v318
        %v320 = vpop.f32.mrf.mxu0
        %321 = vdwg.mxu0
        %322 = vst [vmem:[%s236] sm:$0xff] %v319
        %s323 = sand.u32 %s121, 1
        %s324 = scalar_lea.sflag [#allocation4], %s323
        %s325 = sand.u32 %s121, 1
        %s326 = smul.addr %s325, 8
        %s327 = scalar_lea.vmem [#allocation7], %s326
        // Predicated region
        $region41: #{tpu_custom_call.1} parent=31 // pred_check
          %p328 = pneg %p131
        $region42: #{tpu_custom_call.1} parent=31 // pred_check_branch
          %330 = sbr.rel (%p328) target = $region44
        $region43: #{tpu_custom_call.1} parent=31 // pred_region
          %332 = vsyncadd %s324, 0
          %s333 = sadd.s32 %s26, %s25
          %s334 = smul.addr %s333, 8
          %s335 = scalar_lea.hbm %s3, %s334
          %s337 = sshll.u32 %s327, 4
          %s338 = int_to_ptr.vmem [resolvable:$true] %s337
          %s339 = sshll.u32 %s335, 4
          %s340 = int_to_ptr.hbm [resolvable:$true] %s339
          %342 = dma.vmem_to_hbm [thread:$0]  %s338, 128, %s340, %s324
        $region44: #{tpu_custom_call.1} parent=31 // pred_fallthru
          _
      $region32: #{tpu_custom_call.1} parent=5 // pred_fallthru
        _
      %p343 = scmp.le.s32.totalorder 2, %s16
      // Predicated region
      $region45: #{tpu_custom_call.1} parent=5 // pred_check
        %p344 = pneg %p343
      $region46: #{tpu_custom_call.1} parent=5 // pred_check_branch
        %346 = sbr.rel (%p344) target = $region48
      $region47: #{tpu_custom_call.1} parent=5 // pred_region
        %s347 = ssub.s32 %s16, 2
        // Predicated region
        $region49: #{tpu_custom_call.1} parent=47 // pred_check
          %p348 = pneg %p137
        $region50: #{tpu_custom_call.1} parent=47 // pred_check_branch
          %350 = sbr.rel (%p348) target = $region52
        $region51: #{tpu_custom_call.1} parent=47 // pred_region
          %s351 = sand.u32 %s122, 1
          %s352 = scalar_lea.sflag [#allocation4], %s351
          %s353 = sand.u32 %s122, 1
          %s354 = smul.addr %s353, 8
          %s355 = scalar_lea.vmem [#allocation7], %s354
          %357 = dma.done %s352, 128
        $region52: #{tpu_custom_call.1} parent=47 // pred_fallthru
          _
      $region48: #{tpu_custom_call.1} parent=5 // pred_fallthru
        _
    $region6: #{tpu_custom_call.1} parent=1 // loop_footer
      %s20 = sadd.s32 1, %s16
    $region7: #{tpu_custom_call.1} parent=1 // loop_footer_branch
      %15 = sbr.rel target = $region3
    $region8: #{tpu_custom_call.1} parent=1 // loop_exit
      _
    %358 = vsyncpa [#allocation3], 1
    %s359 = scalar_lea.sflag [#allocation3], 1
    %360 = vsyncpa %s359, 1
    %361 = vsyncpa [#allocation6], 1
    %362 = vsyncpa [#allocation4], 1
    %s363 = scalar_lea.sflag [#allocation4], 1
    %364 = vsyncpa %s363, 1

</llo_original>
